<compile_context>
chip_gen: v7x
topology: tpu7x:2x2x1
jax: 0.10.0
libtpu: 0.0.40
codegen_flags: <defaults>
</compile_context>

<pallas_src>
import numpy as np
import jax
import jax.numpy as jnp
from jax.experimental import pallas as pl
from jax.experimental.pallas import tpu as pltpu


_DOUBLE_BUFFERED_BLOCK_BUDGET = 12 * 1024 * 1024  # bytes; safe inside v7x's 64 MiB VMEM
_VREG_TILE_ELEMS = 8192                           # cap acc_rows * tile_S (~32 live f32 vregs)


def _pick_tile_s(S, bytes_per_lane, acc_rows, batch):
    """Pick a lane-aligned tile size along the flattened spatial axis S."""
    if S % 128 != 0:
        # Full-extent block: still correct (full-dim exception), just not lane-tiled.
        return S

    def fits(t):
        return (2 * t * bytes_per_lane <= _DOUBLE_BUFFERED_BLOCK_BUDGET
                and acc_rows * t <= _VREG_TILE_ELEMS)

    cands = [t for t in range(128, S + 1, 128) if S % t == 0 and fits(t)]
    if not cands:
        return 128
    # Prefer the largest tile <= 2048 lanes that still yields >= 8 grid steps
    # (pipeline depth + keeps both v7x TensorCores busy); otherwise the largest
    # tile <= 2048 lanes; otherwise the largest that fits the budgets.
    pref = [t for t in cands if t <= 2048 and (S // t) * batch >= 8]
    if pref:
        return max(pref)
    mid = [t for t in cands if t <= 2048]
    return max(mid) if mid else max(cands)


def _freq_mix_kernel(x_ref, f_ref, o_ref):
    """Cin != Cout branch: complex per-position multiply + reduce over Cin.

    x_ref: (2*Cin, tS)        rows [0:Cin] real, [Cin:2Cin] imag
    f_ref: (2*Cin, Cout, tS)  f_ref[ci] / f_ref[Cin+ci] = real/imag filters of input ch ci
    o_ref: (2*Cout, tS)       rows [0:Cout] real, [Cout:2Cout] imag
    """
    cin = x_ref.shape[0] // 2
    cout = o_ref.shape[0] // 2
    ts = x_ref.shape[-1]

    acc_r = jnp.zeros((cout, ts), jnp.float32)
    acc_i = jnp.zeros((cout, ts), jnp.float32)
    # Unrolled accumulation over input channels: working set stays at
    # (Cout, tS) vreg tiles on the VPU; no (Cout, Cin, tS) temporaries and no
    # XLU cross-sublane reduction.  Filter tiles are loaded per-ci (contiguous
    # leading-axis block loads) instead of loading the whole filter block.
    for ci in range(cin):
        xr = jnp.broadcast_to(
            x_ref[ci:ci + 1, :].astype(jnp.float32), (cout, ts))
        xi = jnp.broadcast_to(
            x_ref[cin + ci:cin + ci + 1, :].astype(jnp.float32), (cout, ts))
        fr = f_ref[ci].astype(jnp.float32)        # (Cout, tS)
        fi = f_ref[cin + ci].astype(jnp.float32)  # (Cout, tS)
        acc_r = acc_r + (xr * fr - xi * fi)
        acc_i = acc_i + (xr * fi + xi * fr)
    # Accumulators never round-trip VMEM; exactly one lane-dense store per half.
    o_ref[0:cout, :] = acc_r
    o_ref[cout:2 * cout, :] = acc_i


def _freq_eltwise_kernel(x_ref, f_ref, o_ref):
    """Cin == Cout branch: pure complex elementwise multiply.

    x_ref, o_ref: (2*C, tS); f_ref: (2*C, tS).
    """
    c = x_ref.shape[0] // 2
    xr = x_ref[0:c, :].astype(jnp.float32)
    xi = x_ref[c:2 * c, :].astype(jnp.float32)
    fr = f_ref[0:c, :].astype(jnp.float32)
    fi = f_ref[c:2 * c, :].astype(jnp.float32)
    o_ref[0:c, :] = xr * fr - xi * fi
    o_ref[c:2 * c, :] = xr * fi + xi * fr


class FrequencyConv2D:
    """JAX/Pallas port of the PyTorch FrequencyConv2D module."""

    def __init__(self, in_channels, out_channels, kernel_size, key,
                 filter_dtype=jnp.float32):
        # filter_dtype=jnp.bfloat16 halves filter HBM traffic / VMEM on v6e/v7x
        # (kernels upcast to f32 and accumulate in f32); keep f32 on v5e.
        self.in_channels = in_channels
        self.out_channels = out_channels
        self.kernel_size = kernel_size
        self.filter_dtype = filter_dtype
        bound = 1.0 / (in_channels ** 0.5)
        if in_channels != out_channels:
            shape = (out_channels, in_channels, kernel_size, kernel_size)
        else:
            shape = (out_channels, kernel_size, kernel_size)
        kr, ki = jax.random.split(key)
        # deterministic init mirroring nn.init.uniform_(-bound, bound) on real/imag
        self.filt_r = jax.random.uniform(kr, shape, jnp.float32, -bound, bound)
        self.filt_i = jax.random.uniform(ki, shape, jnp.float32, -bound, bound)

        # Pre-pack the filters ONCE into the fused planar layout used by the
        # kernels (no per-call filter reshuffle).
        S = kernel_size * kernel_size
        if in_channels != out_channels:
            fr = self.filt_r.reshape(out_channels, in_channels, S)
            fi = self.filt_i.reshape(out_channels, in_channels, S)
            # (2*Cin, Cout, S): leading-axis index ci / Cin+ci gives the
            # (Cout, S) real/imag filter plane -> contiguous block loads.
            self.filt_fused = jnp.concatenate(
                [jnp.transpose(fr, (1, 0, 2)), jnp.transpose(fi, (1, 0, 2))],
                axis=0).astype(filter_dtype)
        else:
            fr = self.filt_r.reshape(out_channels, S)
            fi = self.filt_i.reshape(out_channels, S)
            self.filt_fused = jnp.concatenate([fr, fi], axis=0).astype(filter_dtype)

    def forward_planar(self, x_fused):
        """x_fused: (B, 2*Cin, S) f32, rows [0:Cin]=real, [Cin:2Cin]=imag.

        Returns (B, 2*Cout, S) f32 in the same fused layout.  Use this entry
        point between layers to avoid complex<->planar HBM round trips.
        """
        B, two_cin, S = x_fused.shape
        cin, cout = self.in_channels, self.out_channels
        assert two_cin == 2 * cin
        f_item = jnp.dtype(self.filter_dtype).itemsize

        if cin != cout:
            bytes_per_lane = 4 * 2 * cin + f_item * 2 * cin * cout + 4 * 2 * cout
            ts = _pick_tile_s(S, bytes_per_lane, cout, B)
            n_s = S // ts
            vmem_limit = int(min(40 * 1024 * 1024,
                                 max(16 * 1024 * 1024,
                                     2 * ts * bytes_per_lane + 4 * 1024 * 1024)))
            out = pl.pallas_call(
                _freq_mix_kernel,
                out_shape=jax.ShapeDtypeStruct((B, 2 * cout, S), jnp.float32),
                # B is the innermost (fastest-varying) grid axis so the filter
                # block, whose index depends only on s, stays VMEM-resident.
                grid=(n_s, B),
                in_specs=[
                    pl.BlockSpec((None, 2 * cin, ts), lambda s, b: (b, 0, s)),
                    pl.BlockSpec((2 * cin, cout, ts), lambda s, b: (0, 0, s)),
                ],
                out_specs=pl.BlockSpec((None, 2 * cout, ts), lambda s, b: (b, 0, s)),
                compiler_params=pltpu.CompilerParams(
                    dimension_semantics=("parallel", "parallel"),
                    vmem_limit_bytes=vmem_limit),
            )(x_fused, self.filt_fused)
        else:
            bytes_per_lane = (4 + f_item + 4) * 2 * cout
            ts = _pick_tile_s(S, bytes_per_lane, 2 * cout, B)
            n_s = S // ts
            vmem_limit = int(min(40 * 1024 * 1024,
                                 max(16 * 1024 * 1024,
                                     2 * ts * bytes_per_lane + 4 * 1024 * 1024)))
            out = pl.pallas_call(
                _freq_eltwise_kernel,
                out_shape=jax.ShapeDtypeStruct((B, 2 * cout, S), jnp.float32),
                grid=(n_s, B),
                in_specs=[
                    pl.BlockSpec((None, 2 * cout, ts), lambda s, b: (b, 0, s)),
                    pl.BlockSpec((2 * cout, ts), lambda s, b: (0, s)),
                ],
                out_specs=pl.BlockSpec((None, 2 * cout, ts), lambda s, b: (b, 0, s)),
                compiler_params=pltpu.CompilerParams(
                    dimension_semantics=("parallel", "parallel"),
                    vmem_limit_bytes=vmem_limit),
            )(x_fused, self.filt_fused)
        return out

    def __call__(self, x):
        """x: complex64 (B, Cin, H, W) with H == W == kernel_size (the PyTorch
        module broadcasts its (k, k) filters against (H, W))."""
        B, cin, H, W = x.shape
        if cin != self.in_channels or H != self.kernel_size or W != self.kernel_size:
            raise ValueError(
                f"expected input (B, {self.in_channels}, {self.kernel_size}, "
                f"{self.kernel_size}); got {x.shape}")
        S = H * W
        xr = jnp.real(x).reshape(B, cin, S).astype(jnp.float32)
        xi = jnp.imag(x).reshape(B, cin, S).astype(jnp.float32)
        # TODO(synk): in a multi-layer pipeline keep activations in this fused
        # planar layout (call forward_planar directly) so the complex<->planar
        # HBM passes below happen only at the model boundary, not every layer.
        x_fused = jnp.concatenate([xr, xi], axis=1)        # (B, 2*Cin, S)
        out_fused = self.forward_planar(x_fused)           # (B, 2*Cout, S)
        cout = self.out_channels
        out = (out_fused[:, :cout, :]
               + 1j * out_fused[:, cout:, :]).astype(jnp.complex64)
        return out.reshape(B, cout, H, W)


def _reference(x, filt_r, filt_i, in_channels, out_channels):
    """Pure numpy reference of the PyTorch forward (complex arithmetic)."""
    x = np.asarray(x)
    f = np.asarray(filt_r) + 1j * np.asarray(filt_i)
    if in_channels != out_channels:
        # (B,1,Cin,H,W) * (1,Cout,Cin,H,W) -> sum over Cin
        return (x[:, None, :, :, :] * f[None, :, :, :, :]).sum(axis=2)
    else:
        return x * f[None, :, :, :]


if __name__ == "__main__":
    key = jax.random.PRNGKey(0)
    k_in, k_mod1, k_mod2 = jax.random.split(key, 3)

    B, Cin, Cout, K = 2, 4, 8, 16  # H = W = kernel_size = 16, so S = H*W = 256
    kr, ki = jax.random.split(k_in)
    x = (jax.random.normal(kr, (B, Cin, K, K), jnp.float32)
         + 1j * jax.random.normal(ki, (B, Cin, K, K), jnp.float32)
         ).astype(jnp.complex64)

    # branch 1: in_channels != out_channels (broadcast-multiply + channel reduce)
    mod_mix = FrequencyConv2D(Cin, Cout, K, k_mod1)
    y_mix = jax.block_until_ready(mod_mix(x))
    ref_mix = _reference(x, mod_mix.filt_r, mod_mix.filt_i, Cin, Cout)
    assert y_mix.shape == (B, Cout, K, K)
    assert np.allclose(np.asarray(y_mix), ref_mix, rtol=1e-4, atol=1e-4)

    # branch 2: in_channels == out_channels (pure complex elementwise multiply)
    mod_eq = FrequencyConv2D(Cin, Cin, K, k_mod2)
    y_eq = jax.block_until_ready(mod_eq(x))
    ref_eq = _reference(x, mod_eq.filt_r, mod_eq.filt_i, Cin, Cin)
    assert y_eq.shape == (B, Cin, K, K)
    assert np.allclose(np.asarray(y_eq), ref_eq, rtol=1e-4, atol=1e-4)

    print("KERNEL_OK")
</pallas_src>

<mosaic_0001>
module attributes {stable_mosaic.version = 11 : i64} {
  func.func @_freq_mix_kernel(%arg0: i32, %arg1: i32, %arg2: memref<1x8x256xf32, #tpu.memory_space<vmem>>, %arg3: memref<8x8x256xf32, #tpu.memory_space<vmem>>, %arg4: memref<1x16x256xf32, #tpu.memory_space<vmem>>) attributes {dimension_semantics = [#tpu.dimension_semantics<parallel>, #tpu.dimension_semantics<parallel>], iteration_bounds = array<i64: 1, 2>, scalar_prefetch = 0 : i64, scratch_operands = 0 : i64, tpu.core_type = #tpu.core_type<tc>, window_params = [{transform_indices = @transform_0, window_bounds = array<i64: 1, 8, 256>}, {transform_indices = @transform_1, window_bounds = array<i64: 8, 8, 256>}, {transform_indices = @transform_2, window_bounds = array<i64: 1, 16, 256>}]} {
    %cst = arith.constant 0.000000e+00 : f32
    %0 = vector.broadcast %cst : f32 to vector<8x256xf32>
    %cst_0 = arith.constant 0.000000e+00 : f32
    %1 = vector.broadcast %cst_0 : f32 to vector<8x256xf32>
    %c0 = arith.constant 0 : index
    %c0_1 = arith.constant 0 : index
    %c0_2 = arith.constant 0 : index
    %2 = vector.load %arg2[%c0, %c0_1, %c0_2] : memref<1x8x256xf32, #tpu.memory_space<vmem>>, vector<1x1x256xf32>
    %3 = vector.shape_cast %2 : vector<1x1x256xf32> to vector<1x256xf32>
    %4 = vector.shape_cast %3 : vector<1x256xf32> to vector<1x256xf32>
    %5 = vector.broadcast %4 : vector<1x256xf32> to vector<8x256xf32>
    %c0_3 = arith.constant 0 : index
    %c4 = arith.constant 4 : index
    %c0_4 = arith.constant 0 : index
    %6 = vector.load %arg2[%c0_3, %c4, %c0_4] : memref<1x8x256xf32, #tpu.memory_space<vmem>>, vector<1x1x256xf32>
    %7 = vector.shape_cast %6 : vector<1x1x256xf32> to vector<1x256xf32>
    %8 = vector.shape_cast %7 : vector<1x256xf32> to vector<1x256xf32>
    %9 = vector.broadcast %8 : vector<1x256xf32> to vector<8x256xf32>
    %c0_5 = arith.constant 0 : index
    %c0_6 = arith.constant 0 : index
    %c0_7 = arith.constant 0 : index
    %10 = vector.load %arg3[%c0_5, %c0_6, %c0_7] : memref<8x8x256xf32, #tpu.memory_space<vmem>>, vector<1x8x256xf32>
    %11 = vector.shape_cast %10 : vector<1x8x256xf32> to vector<8x256xf32>
    %c4_8 = arith.constant 4 : index
    %c0_9 = arith.constant 0 : index
    %c0_10 = arith.constant 0 : index
    %12 = vector.load %arg3[%c4_8, %c0_9, %c0_10] : memref<8x8x256xf32, #tpu.memory_space<vmem>>, vector<1x8x256xf32>
    %13 = vector.shape_cast %12 : vector<1x8x256xf32> to vector<8x256xf32>
    %14 = arith.mulf %5, %11 : vector<8x256xf32>
    %15 = arith.mulf %9, %13 : vector<8x256xf32>
    %16 = arith.subf %14, %15 : vector<8x256xf32>
    %17 = arith.addf %0, %16 : vector<8x256xf32>
    %18 = arith.mulf %5, %13 : vector<8x256xf32>
    %19 = arith.mulf %9, %11 : vector<8x256xf32>
    %20 = arith.addf %18, %19 : vector<8x256xf32>
    %21 = arith.addf %1, %20 : vector<8x256xf32>
    %c0_11 = arith.constant 0 : index
    %c1 = arith.constant 1 : index
    %c0_12 = arith.constant 0 : index
    %22 = vector.load %arg2[%c0_11, %c1, %c0_12] : memref<1x8x256xf32, #tpu.memory_space<vmem>>, vector<1x1x256xf32>
    %23 = vector.shape_cast %22 : vector<1x1x256xf32> to vector<1x256xf32>
    %24 = vector.shape_cast %23 : vector<1x256xf32> to vector<1x256xf32>
    %25 = vector.broadcast %24 : vector<1x256xf32> to vector<8x256xf32>
    %c0_13 = arith.constant 0 : index
    %c5 = arith.constant 5 : index
    %c0_14 = arith.constant 0 : index
    %26 = vector.load %arg2[%c0_13, %c5, %c0_14] : memref<1x8x256xf32, #tpu.memory_space<vmem>>, vector<1x1x256xf32>
    %27 = vector.shape_cast %26 : vector<1x1x256xf32> to vector<1x256xf32>
    %28 = vector.shape_cast %27 : vector<1x256xf32> to vector<1x256xf32>
    %29 = vector.broadcast %28 : vector<1x256xf32> to vector<8x256xf32>
    %c1_15 = arith.constant 1 : index
    %c0_16 = arith.constant 0 : index
    %c0_17 = arith.constant 0 : index
    %30 = vector.load %arg3[%c1_15, %c0_16, %c0_17] : memref<8x8x256xf32, #tpu.memory_space<vmem>>, vector<1x8x256xf32>
    %31 = vector.shape_cast %30 : vector<1x8x256xf32> to vector<8x256xf32>
    %c5_18 = arith.constant 5 : index
    %c0_19 = arith.constant 0 : index
    %c0_20 = arith.constant 0 : index
    %32 = vector.load %arg3[%c5_18, %c0_19, %c0_20] : memref<8x8x256xf32, #tpu.memory_space<vmem>>, vector<1x8x256xf32>
    %33 = vector.shape_cast %32 : vector<1x8x256xf32> to vector<8x256xf32>
    %34 = arith.mulf %25, %31 : vector<8x256xf32>
    %35 = arith.mulf %29, %33 : vector<8x256xf32>
    %36 = arith.subf %34, %35 : vector<8x256xf32>
    %37 = arith.addf %17, %36 : vector<8x256xf32>
    %38 = arith.mulf %25, %33 : vector<8x256xf32>
    %39 = arith.mulf %29, %31 : vector<8x256xf32>
    %40 = arith.addf %38, %39 : vector<8x256xf32>
    %41 = arith.addf %21, %40 : vector<8x256xf32>
    %c0_21 = arith.constant 0 : index
    %c2 = arith.constant 2 : index
    %c0_22 = arith.constant 0 : index
    %42 = vector.load %arg2[%c0_21, %c2, %c0_22] : memref<1x8x256xf32, #tpu.memory_space<vmem>>, vector<1x1x256xf32>
    %43 = vector.shape_cast %42 : vector<1x1x256xf32> to vector<1x256xf32>
    %44 = vector.shape_cast %43 : vector<1x256xf32> to vector<1x256xf32>
    %45 = vector.broadcast %44 : vector<1x256xf32> to vector<8x256xf32>
    %c0_23 = arith.constant 0 : index
    %c6 = arith.constant 6 : index
    %c0_24 = arith.constant 0 : index
    %46 = vector.load %arg2[%c0_23, %c6, %c0_24] : memref<1x8x256xf32, #tpu.memory_space<vmem>>, vector<1x1x256xf32>
    %47 = vector.shape_cast %46 : vector<1x1x256xf32> to vector<1x256xf32>
    %48 = vector.shape_cast %47 : vector<1x256xf32> to vector<1x256xf32>
    %49 = vector.broadcast %48 : vector<1x256xf32> to vector<8x256xf32>
    %c2_25 = arith.constant 2 : index
    %c0_26 = arith.constant 0 : index
    %c0_27 = arith.constant 0 : index
    %50 = vector.load %arg3[%c2_25, %c0_26, %c0_27] : memref<8x8x256xf32, #tpu.memory_space<vmem>>, vector<1x8x256xf32>
    %51 = vector.shape_cast %50 : vector<1x8x256xf32> to vector<8x256xf32>
    %c6_28 = arith.constant 6 : index
    %c0_29 = arith.constant 0 : index
    %c0_30 = arith.constant 0 : index
    %52 = vector.load %arg3[%c6_28, %c0_29, %c0_30] : memref<8x8x256xf32, #tpu.memory_space<vmem>>, vector<1x8x256xf32>
    %53 = vector.shape_cast %52 : vector<1x8x256xf32> to vector<8x256xf32>
    %54 = arith.mulf %45, %51 : vector<8x256xf32>
    %55 = arith.mulf %49, %53 : vector<8x256xf32>
    %56 = arith.subf %54, %55 : vector<8x256xf32>
    %57 = arith.addf %37, %56 : vector<8x256xf32>
    %58 = arith.mulf %45, %53 : vector<8x256xf32>
    %59 = arith.mulf %49, %51 : vector<8x256xf32>
    %60 = arith.addf %58, %59 : vector<8x256xf32>
    %61 = arith.addf %41, %60 : vector<8x256xf32>
    %c0_31 = arith.constant 0 : index
    %c3 = arith.constant 3 : index
    %c0_32 = arith.constant 0 : index
    %62 = vector.load %arg2[%c0_31, %c3, %c0_32] : memref<1x8x256xf32, #tpu.memory_space<vmem>>, vector<1x1x256xf32>
    %63 = vector.shape_cast %62 : vector<1x1x256xf32> to vector<1x256xf32>
    %64 = vector.shape_cast %63 : vector<1x256xf32> to vector<1x256xf32>
    %65 = vector.broadcast %64 : vector<1x256xf32> to vector<8x256xf32>
    %c0_33 = arith.constant 0 : index
    %c7 = arith.constant 7 : index
    %c0_34 = arith.constant 0 : index
    %66 = vector.load %arg2[%c0_33, %c7, %c0_34] : memref<1x8x256xf32, #tpu.memory_space<vmem>>, vector<1x1x256xf32>
    %67 = vector.shape_cast %66 : vector<1x1x256xf32> to vector<1x256xf32>
    %68 = vector.shape_cast %67 : vector<1x256xf32> to vector<1x256xf32>
    %69 = vector.broadcast %68 : vector<1x256xf32> to vector<8x256xf32>
    %c3_35 = arith.constant 3 : index
    %c0_36 = arith.constant 0 : index
    %c0_37 = arith.constant 0 : index
    %70 = vector.load %arg3[%c3_35, %c0_36, %c0_37] : memref<8x8x256xf32, #tpu.memory_space<vmem>>, vector<1x8x256xf32>
    %71 = vector.shape_cast %70 : vector<1x8x256xf32> to vector<8x256xf32>
    %c7_38 = arith.constant 7 : index
    %c0_39 = arith.constant 0 : index
    %c0_40 = arith.constant 0 : index
    %72 = vector.load %arg3[%c7_38, %c0_39, %c0_40] : memref<8x8x256xf32, #tpu.memory_space<vmem>>, vector<1x8x256xf32>
    %73 = vector.shape_cast %72 : vector<1x8x256xf32> to vector<8x256xf32>
    %74 = arith.mulf %65, %71 : vector<8x256xf32>
    %75 = arith.mulf %69, %73 : vector<8x256xf32>
    %76 = arith.subf %74, %75 : vector<8x256xf32>
    %77 = arith.addf %57, %76 : vector<8x256xf32>
    %78 = arith.mulf %65, %73 : vector<8x256xf32>
    %79 = arith.mulf %69, %71 : vector<8x256xf32>
    %80 = arith.addf %78, %79 : vector<8x256xf32>
    %81 = arith.addf %61, %80 : vector<8x256xf32>
    %c0_41 = arith.constant 0 : index
    %c0_42 = arith.constant 0 : index
    %c0_43 = arith.constant 0 : index
    %82 = vector.load %arg4[%c0_41, %c0_42, %c0_43] : memref<1x16x256xf32, #tpu.memory_space<vmem>>, vector<1x8x256xf32>
    %83 = vector.shape_cast %82 : vector<1x8x256xf32> to vector<8x256xf32>
    %84 = vector.shape_cast %77 : vector<8x256xf32> to vector<1x8x256xf32>
    tpu.vector_store %arg4[%c0_41, %c0_42, %c0_43], %84 {strides = array<i32>} : memref<1x16x256xf32, #tpu.memory_space<vmem>>, vector<1x8x256xf32>,
    %c0_44 = arith.constant 0 : index
    %c8 = arith.constant 8 : index
    %c0_45 = arith.constant 0 : index
    %85 = vector.load %arg4[%c0_44, %c8, %c0_45] : memref<1x16x256xf32, #tpu.memory_space<vmem>>, vector<1x8x256xf32>
    %86 = vector.shape_cast %85 : vector<1x8x256xf32> to vector<8x256xf32>
    %87 = vector.shape_cast %81 : vector<8x256xf32> to vector<1x8x256xf32>
    tpu.vector_store %arg4[%c0_44, %c8, %c0_45], %87 {strides = array<i32>} : memref<1x16x256xf32, #tpu.memory_space<vmem>>, vector<1x8x256xf32>,
    return
  }
  func.func @transform_0(%arg0: i32, %arg1: i32) -> (i32, i32, i32) {
    %c0_i32 = arith.constant 0 : i32
    %c0_i32_0 = arith.constant 0 : i32
    return %arg1, %c0_i32, %arg0 : i32, i32, i32
  }
  func.func @transform_1(%arg0: i32, %arg1: i32) -> (i32, i32, i32) {
    %c0_i32 = arith.constant 0 : i32
    %c0_i32_0 = arith.constant 0 : i32
    %c0_i32_1 = arith.constant 0 : i32
    return %c0_i32, %c0_i32_0, %arg0 : i32, i32, i32
  }
  func.func @transform_2(%arg0: i32, %arg1: i32) -> (i32, i32, i32) {
    %c0_i32 = arith.constant 0 : i32
    %c0_i32_0 = arith.constant 0 : i32
    return %arg1, %c0_i32, %arg0 : i32, i32, i32
  }
}

</mosaic_0001>

<llo_original>
// kernel: tpu_custom_call.1
$region0: #{tpu_custom_call.1}
  #allocation0 [shape = 'u32[]', space=smem, size = 0x4, offset = 0x4, fixed_abs, tag = 'smem constant byte address 0x4 - core index']
  #allocation1 [shape = 'u32[144,128]{1,0:T(1,128)}', space=vmem, size = 0x12000, scoped, tag = 'internal scratch']
  %s0 = inlined_call_operand.hbm [shape: f32[2,8,256], index: 0, kind: input, shape index: {}]
  %s1 = inlined_call_operand.hbm [shape: f32[8,8,256], index: 1, kind: input, shape index: {}]
  %s2 = inlined_call_operand.hbm [shape: f32[2,16,256], index: 2, kind: output, shape index: {}]
  %s3 = sld [smem:[#allocation0]]
  $region49: #{tpu_custom_call.1} parent=0
    _
  %s5 = ssub.s32 1, %s3
  %s6 = scalar_select 0, %s5, %s3
  $region1: #{tpu_custom_call.1} parent=0
    #allocation2 [shape = 'u8[16384]{0}', space=vmem, size = 0x4000, scoped, tag = 'input window, operand 0']
    #allocation3 [shape = 's32[2]{0}', space=sflag, size = 0x8, scoped, tag = 'scoped memory for tpu_custom_call.1']
    #allocation4 [shape = 's32[2]{0}', space=sflag, size = 0x8, scoped, tag = 'scoped memory for tpu_custom_call.1']
    #allocation5 [shape = 'u8[65536]{0}', space=vmem, size = 0x10000, scoped, tag = 'input window, operand 1, single buffered']
    #allocation6 [shape = 's32[1]{0}', space=sflag, size = 0x4, scoped, tag = 'scoped memory for tpu_custom_call.1']
    #allocation7 [shape = 'u8[32768]{0}', space=vmem, size = 0x8000, scoped, tag = 'output window, operand 0']
    %7 = vsyncpa [#allocation3], 0
    %s8 = scalar_lea.sflag [#allocation3], 1
    %9 = vsyncpa %s8, 0
    %10 = vsyncpa [#allocation6], 0
    %11 = vsyncpa [#allocation4], 0
    %s12 = scalar_lea.sflag [#allocation4], 1
    %13 = vsyncpa %s12, 0
    loop: start=0, step=1, limit=4
    $region2: #{tpu_custom_call.1} parent=1 // loop_pre_header
      _
    $region3: #{tpu_custom_call.1} parent=1 // loop_header
      %s15 = sphi 0, %s19
      %p16 = scmp.ge.s32.totalorder %s15, 4
      %s22 = sphi 0, %s34
      %s23 = sphi 0, %s30
      %s24 = sphi 0, %s22
      %s25 = sphi 0, %s23
      %s26 = sphi 0, %s24
      %s27 = sphi 0, %s25
      %s39 = sphi 0, %s41
      %s42 = sphi 0, %s39
      %s43 = sphi 0, %s42
      %s59 = sphi 0, %s43
      %s65 = sphi 0, %s67
      %s68 = sphi 0, %s65
      %s69 = sphi 0, %s68
      %s85 = sphi 0, %s69
      %s93 = sphi 0, %s95
      %s96 = sphi 0, %s93
      %s97 = sphi 0, %s96
      %s113 = sphi 0, %s97
    $region4: #{tpu_custom_call.1} parent=1 // loop_header_branch
      %18 = sbr.rel (%p16) target = $region8
    $region5: #{tpu_custom_call.1} parent=1 // loop_body
      %s20 = ssub.s32 %s15, 1
      %s21 = ssub.s32 %s15, 2
      %s28 = sadd.s32 1, %s23
      %p29 = scmp.ge.s32.totalorder %s28, 2
      %s30 = scalar_select %p29, 0, %s28
      %s31 = sadd.s32 1, %s22
      %s32 = scalar_select %p29, %s31, %s22
      %p33 = scmp.ge.s32.totalorder %s32, 1
      %s34 = scalar_select %p33, 0, %s32
      %s35 = ssub.s32 %s23, %s30
      %s36 = ssub.s32 %s22, %s34
      %s37 = sor.u32 %s35, %s36
      %p38 = scmp.eq.s32.totalorder %s37, 0
      %s40 = sadd.s32 %s39, 1
      %s41 = scalar_select %p38, %s39, %s40
      %p44 = pneg %p38
      %p45 = scmp.eq.s32.totalorder %s15, 1
      %p46 = por %p44, %p45
      %p47 = scmp.ne.s32.totalorder %s39, %s42
      %p48 = scmp.eq.s32.totalorder %s15, 0
      %p49 = por %p47, %p48
      %p50 = scmp.ne.s32.totalorder %s39, %s42
      %p51 = scmp.eq.s32.totalorder %s20, 1
      %p52 = por %p50, %p51
      %p53 = scmp.ne.s32.totalorder %s42, %s43
      %p54 = scmp.eq.s32.totalorder %s20, 0
      %p55 = por %p53, %p54
      %p56 = scmp.ne.s32.totalorder %s42, %s43
      %p57 = scmp.eq.s32.totalorder %s21, 1
      %p58 = por %p56, %p57
      %p60 = scmp.ne.s32.totalorder %s43, %s59
      %p61 = scmp.eq.s32.totalorder %s21, 0
      %p62 = por %p60, %p61
      %s63 = ssub.s32 %s22, %s34
      %p64 = scmp.eq.s32.totalorder %s63, 0
      %s66 = sadd.s32 %s65, 1
      %s67 = scalar_select %p64, %s65, %s66
      %p70 = pneg %p64
      %p71 = scmp.eq.s32.totalorder %s15, 1
      %p72 = por %p70, %p71
      %p73 = scmp.ne.s32.totalorder %s65, %s68
      %p74 = scmp.eq.s32.totalorder %s15, 0
      %p75 = por %p73, %p74
      %p76 = scmp.ne.s32.totalorder %s65, %s68
      %p77 = scmp.eq.s32.totalorder %s20, 1
      %p78 = por %p76, %p77
      %p79 = scmp.ne.s32.totalorder %s68, %s69
      %p80 = scmp.eq.s32.totalorder %s20, 0
      %p81 = por %p79, %p80
      %p82 = scmp.ne.s32.totalorder %s68, %s69
      %p83 = scmp.eq.s32.totalorder %s21, 1
      %p84 = por %p82, %p83
      %p86 = scmp.ne.s32.totalorder %s69, %s85
      %p87 = scmp.eq.s32.totalorder %s21, 0
      %p88 = por %p86, %p87
      %s89 = ssub.s32 %s23, %s30
      %s90 = ssub.s32 %s22, %s34
      %s91 = sor.u32 %s89, %s90
      %p92 = scmp.eq.s32.totalorder %s91, 0
      %s94 = sadd.s32 %s93, 1
      %s95 = scalar_select %p92, %s93, %s94
      %p98 = pneg %p92
      %p99 = scmp.eq.s32.totalorder %s15, 1
      %p100 = por %p98, %p99
      %p101 = scmp.ne.s32.totalorder %s93, %s96
      %p102 = scmp.eq.s32.totalorder %s15, 0
      %p103 = por %p101, %p102
      %p104 = scmp.ne.s32.totalorder %s93, %s96
      %p105 = scmp.eq.s32.totalorder %s20, 1
      %p106 = por %p104, %p105
      %p107 = scmp.ne.s32.totalorder %s96, %s97
      %p108 = scmp.eq.s32.totalorder %s20, 0
      %p109 = por %p107, %p108
      %p110 = scmp.ne.s32.totalorder %s96, %s97
      %p111 = scmp.eq.s32.totalorder %s21, 1
      %p112 = por %p110, %p111
      %p114 = scmp.ne.s32.totalorder %s97, %s113
      %p115 = scmp.eq.s32.totalorder %s21, 0
      %p116 = por %p114, %p115
      %p117 = scmp.le.s32.totalorder 1, %s15
      %p118 = scmp.lt.s32.totalorder %s15, 3
      %p119 = pnand %p117, %p118
      %p120 = pneg %p119
      // Predicated region
      $region9: #{tpu_custom_call.1} parent=5 // pred_check
        _
      $region10: #{tpu_custom_call.1} parent=5 // pred_check_branch
        %122 = sbr.rel (%p119) target = $region12
      $region11: #{tpu_custom_call.1} parent=5 // pred_region
        %s123 = ssub.s32 %s15, 1
        // Predicated region
        $region13: #{tpu_custom_call.1} parent=11 // pred_check
          %p124 = pneg %p81
        $region14: #{tpu_custom_call.1} parent=11 // pred_check_branch
          %126 = sbr.rel (%p124) target = $region16
        $region15: #{tpu_custom_call.1} parent=11 // pred_region
          %s127 = smul.u32 2, %s24
          %s129 = ssub.s32 2048, 2048
          %130 = vsyncadd [#allocation6], %s129
          %s131 = smul.addr %s127, 128
          %s132 = scalar_lea.hbm %s1, %s131
          %s133 = sshll.u32 [#allocation5], 4
          %s134 = int_to_ptr.vmem [resolvable:$true] %s133
          %139 = dma.hbm_to_vmem [thread:$0]  %s132, 2048, %s134, [#allocation6], 256, 256, 16
        $region16: #{tpu_custom_call.1} parent=11 // pred_fallthru
          _
      $region12: #{tpu_custom_call.1} parent=5 // pred_fallthru
        _
      %p140 = scmp.lt.s32.totalorder %s15, 2
      // Predicated region
      $region17: #{tpu_custom_call.1} parent=5 // pred_check
        %p141 = pneg %p140
      $region18: #{tpu_custom_call.1} parent=5 // pred_check_branch
        %143 = sbr.rel (%p141) target = $region20
      $region19: #{tpu_custom_call.1} parent=5 // pred_region
        // Predicated region
        $region21: #{tpu_custom_call.1} parent=19 // pred_check
          %p144 = pneg %p49
        $region22: #{tpu_custom_call.1} parent=19 // pred_check_branch
          %146 = sbr.rel (%p144) target = $region24
        $region23: #{tpu_custom_call.1} parent=19 // pred_region
          %s147 = sand.u32 %s39, 1
          %s148 = scalar_lea.sflag [#allocation3], %s147
          %s149 = sand.u32 %s39, 1
          %s150 = smul.addr %s149, 16
          %s151 = scalar_lea.vmem [#allocation2], %s150
          %s152 = smul.u32 2, %s22
          %s154 = ssub.s32 256, 256
          %155 = vsyncadd %s148, %s154
          %s156 = smul.addr %s23, 2
          %s157 = sadd.s32 %s152, %s156
          %s158 = smul.addr %s157, 128
          %s159 = scalar_lea.hbm %s0, %s158
          %s161 = sshll.u32 %s151, 4
          %s162 = int_to_ptr.vmem [resolvable:$true] %s161
          %164 = dma.hbm_to_vmem [thread:$0]  %s159, 256, %s162, %s148
        $region24: #{tpu_custom_call.1} parent=19 // pred_fallthru
          _
      $region20: #{tpu_custom_call.1} parent=5 // pred_fallthru
        _
      %p165 = scmp.le.s32.totalorder 1, %s15
      %p166 = scmp.lt.s32.totalorder %s15, 3
      %p167 = pnand %p165, %p166
      %p168 = pneg %p167
      // Predicated region
      $region25: #{tpu_custom_call.1} parent=5 // pred_check
        _
      $region26: #{tpu_custom_call.1} parent=5 // pred_check_branch
        %170 = sbr.rel (%p167) target = $region28
      $region27: #{tpu_custom_call.1} parent=5 // pred_region
        %s171 = ssub.s32 %s15, 1
        %s172 = sand.u32 %s42, 1
        %s173 = scalar_lea.sflag [#allocation3], %s172
        %s174 = sand.u32 %s42, 1
        %s175 = smul.addr %s174, 16
        %s176 = scalar_lea.vmem [#allocation2], %s175
        // Predicated region
        $region29: #{tpu_custom_call.1} parent=27 // pred_check
          %p177 = pneg %p55
        $region30: #{tpu_custom_call.1} parent=27 // pred_check_branch
          %179 = sbr.rel (%p177) target = $region32
        $region31: #{tpu_custom_call.1} parent=27 // pred_region
          %180 = dma.done %s173, 256
        $region32: #{tpu_custom_call.1} parent=27 // pred_fallthru
          _
        // Predicated region
        $region33: #{tpu_custom_call.1} parent=27 // pred_check
          %p181 = pneg %p81
        $region34: #{tpu_custom_call.1} parent=27 // pred_check_branch
          %183 = sbr.rel (%p181) target = $region36
        $region35: #{tpu_custom_call.1} parent=27 // pred_region
          %184 = dma.done [#allocation6], 2048
        $region36: #{tpu_custom_call.1} parent=27 // pred_fallthru
          _
        %s185 = sand.u32 %s42, 1
        %s186 = scalar_lea.sflag [#allocation3], %s185
        %s187 = sand.u32 %s42, 1
        %s188 = smul.addr %s187, 16
        %s189 = scalar_lea.vmem [#allocation2], %s188
        %p190 = pneg %p55
        %p191 = pneg %p52
        %p192 = pneg %p81
        %p193 = pneg %p78
        %p194 = pneg %p109
        %p195 = pneg %p106
        %s196 = sand.u32 %s96, 1
        %s197 = scalar_lea.sflag [#allocation4], %s196
        %s198 = sand.u32 %s96, 1
        %s199 = smul.addr %s198, 32
        %s200 = scalar_lea.vmem [#allocation7], %s199
        %s201 = smul.u32 2, %s24
        %s202 = smul.u32 2, %s24
        %s203 = smul.u32 2, %s24
        %v204 = vld [vmem:[%s176] ss:$8 sm:$0x3]
        %v206 = vlaneseq
        %v207 = vshrl.u32 %v206, 7
        %v208 = vsub.s32 0, %v207
        %v209 = vrot.slane %v204, %v208
        %v210 = vlaneseq
        %v211 = vshrl.u32 %v210, 7
        %v212 = vsub.s32 1, %v211
        %v213 = vrot.slane %v204, %v212
        %s216 = scalar_lea.vmem %s176, 4 [#allocation2]
        %v217 = vld [vmem:[%s216] ss:$8 sm:$0x3]
        %v219 = vlaneseq
        %v220 = vshrl.u32 %v219, 7
        %v221 = vsub.s32 0, %v220
        %v222 = vrot.slane %v217, %v221
        %v223 = vlaneseq
        %v224 = vshrl.u32 %v223, 7
        %v225 = vsub.s32 1, %v224
        %v226 = vrot.slane %v217, %v225
        %v229 = vld [vmem:[#allocation5] sm:$0xff]
        %v230 = vld [vmem:[#allocation5 + $0x8] sm:$0xff]
        %s231 = scalar_lea.vmem [#allocation5], 64
        %v232 = vld [vmem:[%s231] sm:$0xff]
        %v233 = vld [vmem:[%s231 + $0x8] sm:$0xff]
        %v234 = vmul.f32 %v209, %v229
        %v235 = vmul.f32 %v213, %v230
        %v236 = vmul.f32 %v222, %v232
        %v237 = vmul.f32 %v226, %v233
        %v238 = vsub.f32 %v234, %v236
        %v239 = vsub.f32 %v235, %v237
        %v240 = vadd.f32 %v238, 0.0
        %v241 = vadd.f32 %v239, 0.0
        %v242 = vmul.f32 %v209, %v232
        %v243 = vmul.f32 %v213, %v233
        %v244 = vmul.f32 %v222, %v229
        %v245 = vmul.f32 %v226, %v230
        %v246 = vadd.f32 %v242, %v244
        %v247 = vadd.f32 %v243, %v245
        %v248 = vadd.f32 %v246, 0.0
        %v249 = vadd.f32 %v247, 0.0
        %s250 = scalar_lea.vmem %s176, 1 [#allocation2]
        %v251 = vld [vmem:[%s250] ss:$8 sm:$0x3]
        %v253 = vlaneseq
        %v254 = vshrl.u32 %v253, 7
        %v255 = vsub.s32 0, %v254
        %v256 = vrot.slane %v251, %v255
        %v257 = vlaneseq
        %v258 = vshrl.u32 %v257, 7
        %v259 = vsub.s32 1, %v258
        %v260 = vrot.slane %v251, %v259
        %s263 = scalar_lea.vmem %s176, 5 [#allocation2]
        %v264 = vld [vmem:[%s263] ss:$8 sm:$0x3]
        %v266 = vlaneseq
        %v267 = vshrl.u32 %v266, 7
        %v268 = vsub.s32 0, %v267
        %v269 = vrot.slane %v264, %v268
        %v270 = vlaneseq
        %v271 = vshrl.u32 %v270, 7
        %v272 = vsub.s32 1, %v271
        %v273 = vrot.slane %v264, %v272
        %s276 = scalar_lea.vmem [#allocation5], 16
        %v277 = vld [vmem:[%s276] sm:$0xff]
        %v278 = vld [vmem:[%s276 + $0x8] sm:$0xff]
        %s279 = scalar_lea.vmem [#allocation5], 80
        %v280 = vld [vmem:[%s279] sm:$0xff]
        %v281 = vld [vmem:[%s279 + $0x8] sm:$0xff]
        %v282 = vmul.f32 %v256, %v277
        %v283 = vmul.f32 %v260, %v278
        %v284 = vmul.f32 %v269, %v280
        %v285 = vmul.f32 %v273, %v281
        %v286 = vsub.f32 %v282, %v284
        %v287 = vsub.f32 %v283, %v285
        %v288 = vadd.f32 %v240, %v286
        %v289 = vadd.f32 %v241, %v287
        %v290 = vmul.f32 %v256, %v280
        %v291 = vmul.f32 %v260, %v281
        %v292 = vmul.f32 %v269, %v277
        %v293 = vmul.f32 %v273, %v278
        %v294 = vadd.f32 %v290, %v292
        %v295 = vadd.f32 %v291, %v293
        %v296 = vadd.f32 %v248, %v294
        %v297 = vadd.f32 %v249, %v295
        %s298 = scalar_lea.vmem %s176, 2 [#allocation2]
        %v299 = vld [vmem:[%s298] ss:$8 sm:$0x3]
        %v301 = vlaneseq
        %v302 = vshrl.u32 %v301, 7
        %v303 = vsub.s32 0, %v302
        %v304 = vrot.slane %v299, %v303
        %v305 = vlaneseq
        %v306 = vshrl.u32 %v305, 7
        %v307 = vsub.s32 1, %v306
        %v308 = vrot.slane %v299, %v307
        %s311 = scalar_lea.vmem %s176, 6 [#allocation2]
        %v312 = vld [vmem:[%s311] ss:$8 sm:$0x3]
        %v314 = vlaneseq
        %v315 = vshrl.u32 %v314, 7
        %v316 = vsub.s32 0, %v315
        %v317 = vrot.slane %v312, %v316
        %v318 = vlaneseq
        %v319 = vshrl.u32 %v318, 7
        %v320 = vsub.s32 1, %v319
        %v321 = vrot.slane %v312, %v320
        %s324 = scalar_lea.vmem [#allocation5], 32
        %v325 = vld [vmem:[%s324] sm:$0xff]
        %v326 = vld [vmem:[%s324 + $0x8] sm:$0xff]
        %s327 = scalar_lea.vmem [#allocation5], 96
        %v328 = vld [vmem:[%s327] sm:$0xff]
        %v329 = vld [vmem:[%s327 + $0x8] sm:$0xff]
        %v330 = vmul.f32 %v304, %v325
        %v331 = vmul.f32 %v308, %v326
        %v332 = vmul.f32 %v317, %v328
        %v333 = vmul.f32 %v321, %v329
        %v334 = vsub.f32 %v330, %v332
        %v335 = vsub.f32 %v331, %v333
        %v336 = vadd.f32 %v288, %v334
        %v337 = vadd.f32 %v289, %v335
        %v338 = vmul.f32 %v304, %v328
        %v339 = vmul.f32 %v308, %v329
        %v340 = vmul.f32 %v317, %v325
        %v341 = vmul.f32 %v321, %v326
        %v342 = vadd.f32 %v338, %v340
        %v343 = vadd.f32 %v339, %v341
        %v344 = vadd.f32 %v296, %v342
        %v345 = vadd.f32 %v297, %v343
        %s346 = scalar_lea.vmem %s176, 3 [#allocation2]
        %v347 = vld [vmem:[%s346] ss:$8 sm:$0x3]
        %v349 = vlaneseq
        %v350 = vshrl.u32 %v349, 7
        %v351 = vsub.s32 0, %v350
        %v352 = vrot.slane %v347, %v351
        %v353 = vlaneseq
        %v354 = vshrl.u32 %v353, 7
        %v355 = vsub.s32 1, %v354
        %v356 = vrot.slane %v347, %v355
        %s359 = scalar_lea.vmem %s176, 7 [#allocation2]
        %v360 = vld [vmem:[%s359] ss:$8 sm:$0x3]
        %v362 = vlaneseq
        %v363 = vshrl.u32 %v362, 7
        %v364 = vsub.s32 0, %v363
        %v365 = vrot.slane %v360, %v364
        %v366 = vlaneseq
        %v367 = vshrl.u32 %v366, 7
        %v368 = vsub.s32 1, %v367
        %v369 = vrot.slane %v360, %v368
        %s372 = scalar_lea.vmem [#allocation5], 48
        %v373 = vld [vmem:[%s372] sm:$0xff]
        %v374 = vld [vmem:[%s372 + $0x8] sm:$0xff]
        %s375 = scalar_lea.vmem [#allocation5], 112
        %v376 = vld [vmem:[%s375] sm:$0xff]
        %v377 = vld [vmem:[%s375 + $0x8] sm:$0xff]
        %v378 = vmul.f32 %v352, %v373
        %v379 = vmul.f32 %v356, %v374
        %v380 = vmul.f32 %v365, %v376
        %v381 = vmul.f32 %v369, %v377
        %v382 = vsub.f32 %v378, %v380
        %v383 = vsub.f32 %v379, %v381
        %v384 = vadd.f32 %v336, %v382
        %v385 = vadd.f32 %v337, %v383
        %v386 = vmul.f32 %v352, %v376
        %v387 = vmul.f32 %v356, %v377
        %v388 = vmul.f32 %v365, %v373
        %v389 = vmul.f32 %v369, %v374
        %v390 = vadd.f32 %v386, %v388
        %v391 = vadd.f32 %v387, %v389
        %v392 = vadd.f32 %v344, %v390
        %v393 = vadd.f32 %v345, %v391
        %394 = vst [vmem:[%s200] sm:$0xff] %v384
        %395 = vst [vmem:[%s200 + $0x8] sm:$0xff] %v385
        %396 = vst [vmem:[%s200 + $0x10] sm:$0xff] %v392
        %397 = vst [vmem:[%s200 + $0x18] sm:$0xff] %v393
        %s398 = sand.u32 %s96, 1
        %s399 = scalar_lea.sflag [#allocation4], %s398
        %s400 = sand.u32 %s96, 1
        %s401 = smul.addr %s400, 32
        %s402 = scalar_lea.vmem [#allocation7], %s401
        // Predicated region
        $region37: #{tpu_custom_call.1} parent=27 // pred_check
          %p403 = pneg %p106
        $region38: #{tpu_custom_call.1} parent=27 // pred_check_branch
          %405 = sbr.rel (%p403) target = $region40
        $region39: #{tpu_custom_call.1} parent=27 // pred_region
          %s406 = smul.u32 2, %s24
          %s408 = ssub.s32 512, 512
          %409 = vsyncadd %s399, %s408
          %s410 = smul.addr %s25, 4
          %s411 = sadd.s32 %s406, %s410
          %s412 = smul.addr %s411, 128
          %s413 = scalar_lea.hbm %s2, %s412
          %s414 = sshll.u32 %s402, 4
          %s415 = int_to_ptr.vmem [resolvable:$true] %s414
          %420 = dma.vmem_to_hbm [thread:$0]  %s415, 512, %s413, %s399, 256, 256, 16
        $region40: #{tpu_custom_call.1} parent=27 // pred_fallthru
          _
      $region28: #{tpu_custom_call.1} parent=5 // pred_fallthru
        _
      %p421 = scmp.le.s32.totalorder 2, %s15
      // Predicated region
      $region41: #{tpu_custom_call.1} parent=5 // pred_check
        %p422 = pneg %p421
      $region42: #{tpu_custom_call.1} parent=5 // pred_check_branch
        %424 = sbr.rel (%p422) target = $region44
      $region43: #{tpu_custom_call.1} parent=5 // pred_region
        %s425 = ssub.s32 %s15, 2
        // Predicated region
        $region45: #{tpu_custom_call.1} parent=43 // pred_check
          %p426 = pneg %p112
        $region46: #{tpu_custom_call.1} parent=43 // pred_check_branch
          %428 = sbr.rel (%p426) target = $region48
        $region47: #{tpu_custom_call.1} parent=43 // pred_region
          %s429 = sand.u32 %s97, 1
          %s430 = scalar_lea.sflag [#allocation4], %s429
          %s431 = sand.u32 %s97, 1
          %s432 = smul.addr %s431, 32
          %s433 = scalar_lea.vmem [#allocation7], %s432
          %434 = dma.done %s430, 512
        $region48: #{tpu_custom_call.1} parent=43 // pred_fallthru
          _
      $region44: #{tpu_custom_call.1} parent=5 // pred_fallthru
        _
    $region6: #{tpu_custom_call.1} parent=1 // loop_footer
      %s19 = sadd.s32 1, %s15
    $region7: #{tpu_custom_call.1} parent=1 // loop_footer_branch
      %14 = sbr.rel target = $region3
    $region8: #{tpu_custom_call.1} parent=1 // loop_exit
      _
    %435 = vsyncpa [#allocation3], 1
    %s436 = scalar_lea.sflag [#allocation3], 1
    %437 = vsyncpa %s436, 1
    %438 = vsyncpa [#allocation6], 1
    %439 = vsyncpa [#allocation4], 1
    %s440 = scalar_lea.sflag [#allocation4], 1
    %441 = vsyncpa %s440, 1

</llo_original>
